<compile_context>
chip_gen: v5e
topology: v5e:2x2
jax: 0.10.0
libtpu: 0.0.40
codegen_flags: <defaults>
</compile_context>

<pallas_src>
import functools

import jax
import jax.numpy as jnp
from jax.experimental import pallas as pl
from jax.experimental.pallas import tpu as pltpu


def facies_kernel(x_ref, w1_ref, b1_ref, w2_ref, b2_ref, w3_ref, b3_ref,
                  w4_ref, b4_ref, o_ref, *, seq_len):
    tb = x_ref.shape[0]                               # traces in this step
    lp = x_ref.shape[2]                               # padded trace length (lanes)
    cdt = w2_ref.dtype                                # MXU operand dtype (f32/bf16)

    # Per-trace boundary masks (each outer slice is one whole padded trace,
    # lane index = position).  They emulate the zero 'same' padding of the
    # PyTorch convs at every trace's first/last valid sample.
    lane = jax.lax.broadcasted_iota(jnp.int32, (1, 1, lp), 2)
    is_first = lane == 0
    is_last = lane == (seq_len - 1)

    def taps(h):
        """(h[l-1], h[l], h[l+1]) along lanes with zero padding at trace ends."""
        left = jnp.where(is_first, 0.0, pltpu.roll(h, 1, axis=2))
        right = jnp.where(is_last, 0.0, pltpu.roll(h, lp - 1, axis=2))
        return left, h, right

    # conv1 (1 -> 32): K=1 per tap would waste the MXU, so do broadcast outer
    # products on the VPU.  w1_ref[k] is (32, 1); x taps are (tb, 1, lp).
    xl, xc, xr = taps(x_ref[...])
    h = xl * w1_ref[0] + xc * w1_ref[1] + xr * w1_ref[2] + b1_ref[...]
    h = jnp.maximum(h, 0.0)                           # (tb, 32, lp)

    def conv3x1(h, w_ref, b_ref):
        """im2col-fused k=3 conv: one batched MXU matmul, f32 accumulation."""
        hl, hc, hr = taps(h)
        cols = jnp.concatenate([hl, hc, hr], axis=1).astype(cdt)   # (tb, 3*Cin, lp)
        wb = jnp.broadcast_to(w_ref[...], (tb,) + w_ref.shape)     # (tb, Cout, 3*Cin)
        y = jax.lax.dot_general(
            wb, cols,
            dimension_numbers=(((2,), (1,)), ((0,), (0,))),
            preferred_element_type=jnp.float32)
        return y + b_ref[...]                                      # (tb, Cout, lp)

    h = jnp.maximum(conv3x1(h, w2_ref, b2_ref), 0.0)  # (tb, 64, lp)
    h = conv3x1(h, w3_ref, b3_ref)                    # (tb, 128, lp), no ReLU (as in nn.Sequential)

    # fit (1x1 conv): (F,128)@(128,lp) per trace -> output already in PyTorch's
    # (B, F, L) layout; lane-dense store, no transposes anywhere.
    w4b = jnp.broadcast_to(w4_ref[...], (tb,) + w4_ref.shape)
    out = jax.lax.dot_general(
        w4b, h.astype(cdt),
        dimension_numbers=(((2,), (1,)), ((0,), (0,))),
        preferred_element_type=jnp.float32) + b4_ref[...]
    o_ref[...] = out.astype(o_ref.dtype)              # (tb, F, lp)


def facies_forward(x_ncl, params, *, compute_dtype=jnp.float32,
                   traces_per_step=None):
    """x_ncl: (B, 1, L) float32 -> (B, facies_n, L) float32 (same as PyTorch)."""
    w1, b1, w2, b2, w3, b3, w4, b4 = params
    B, cin, L = x_ncl.shape
    assert cin == 1 and L >= 1
    facies_n = w4.shape[0]

    # Pad L to a multiple of 128: lane-dense activations and an unmasked vst
    # on the output.  Padded columns are masked in-kernel and sliced off here.
    lp = max(128, ((L + 127) // 128) * 128)

    # Traces per grid step: amortize per-step overhead while keeping the live
    # activation block inside a budget sized for v7x's 64 MiB VMEM (v5e/v6e
    # have 128 MiB; raise pos_budget there for even bigger blocks).
    if traces_per_step is None:
        pos_budget = 8192                              # ~tb*lp positions per step
        tb = max(1, min(B, pos_budget // lp))
        if B > 1 and -(-B // tb) < 2:                  # keep >=2 steps for v7x's 2 TCs
            tb = -(-B // 2)
    else:
        tb = max(1, min(traces_per_step, B))
    b_pad = -(-B // tb) * tb

    x_p = jnp.pad(x_ncl, ((0, b_pad - B), (0, 0), (0, lp - L)))

    # Kernel weight layouts.
    w1k = jnp.transpose(w1, (0, 2, 1))                           # (3, 32, 1) f32 (VPU)
    b1k = b1.reshape(-1, 1)                                      # (32, 1)
    w2t = jnp.transpose(w2.reshape(3 * 32, 64)).astype(compute_dtype)    # (64, 96)
    b2k = b2.reshape(-1, 1)                                      # (64, 1)
    w3t = jnp.transpose(w3.reshape(3 * 64, 128)).astype(compute_dtype)   # (128, 192)
    b3k = b3.reshape(-1, 1)                                      # (128, 1)
    w4c = w4.astype(compute_dtype)                               # (F, 128)
    b4k = b4.reshape(-1, 1)                                      # (F, 1)

    full = lambda a: pl.BlockSpec(a.shape, lambda b: (0,) * a.ndim)

    flops = 2 * b_pad * lp * (3 * 1 * 32 + 96 * 64 + 192 * 128 + 128 * facies_n)
    bytes_accessed = int(
        x_p.size * x_p.dtype.itemsize + b_pad * facies_n * lp * 4
        + sum(int(a.size) * a.dtype.itemsize
              for a in (w1k, b1k, w2t, b2k, w3t, b3k, w4c, b4k)))

    out = pl.pallas_call(
        functools.partial(facies_kernel, seq_len=L),
        out_shape=jax.ShapeDtypeStruct((b_pad, facies_n, lp), jnp.float32),
        grid_spec=pltpu.PrefetchScalarGridSpec(
            num_scalar_prefetch=0,
            grid=(b_pad // tb,),
            in_specs=[
                pl.BlockSpec((tb, 1, lp), lambda b: (b, 0, 0)),  # tb traces / step
                full(w1k), full(b1k), full(w2t), full(b2k),
                full(w3t), full(b3k), full(w4c), full(b4k),      # VMEM-resident weights
            ],
            out_specs=pl.BlockSpec((tb, facies_n, lp), lambda b: (b, 0, 0)),
        ),
        compiler_params=pltpu.CompilerParams(
            dimension_semantics=("parallel",),
            vmem_limit_bytes=48 * 1024 * 1024,         # safe on v7x (64 MiB); raise on v5e/v6e
        ),
        cost_estimate=pl.CostEstimate(
            flops=flops, transcendentals=0, bytes_accessed=bytes_accessed),
    )(x_p, w1k, b1k, w2t, b2k, w3t, b3k, w4c, b4k)

    return out[:B, :, :L]                              # drop batch + lane padding


def init_params(key, facies_n=4):
    """Deterministic synthetic weights.  k=3 conv weights stored as (k, Cin, Cout)."""
    ks = jax.random.split(key, 8)

    def w(k, shape, fan_in):
        return jax.random.normal(k, shape, jnp.float32) / jnp.sqrt(fan_in)

    w1 = w(ks[0], (3, 1, 32), 3.0)
    b1 = w(ks[1], (32,), 32.0)
    w2 = w(ks[2], (3, 32, 64), 96.0)
    b2 = w(ks[3], (64,), 64.0)
    w3 = w(ks[4], (3, 64, 128), 192.0)
    b3 = w(ks[5], (128,), 128.0)
    w4 = w(ks[6], (facies_n, 128), 128.0)              # 1x1 conv as (Cout, Cin)
    b4 = w(ks[7], (facies_n,), float(facies_n))
    return (w1, b1, w2, b2, w3, b3, w4, b4)


def ref_forward(x_ncl, params):
    """Pure-JAX reference (lax conv, NCH layout) mirroring the PyTorch module."""
    w1, b1, w2, b2, w3, b3, w4, b4 = params

    def conv1d(x, w_oik, b, pad):
        y = jax.lax.conv_general_dilated(
            x, w_oik, window_strides=(1,), padding=[(pad, pad)],
            dimension_numbers=("NCH", "OIH", "NCH"),
            precision=jax.lax.Precision.HIGHEST)
        return y + b.reshape(1, -1, 1)

    to_oik = lambda w_kio: jnp.transpose(w_kio, (2, 1, 0))   # (k,Cin,Cout)->(Cout,Cin,k)
    h = jax.nn.relu(conv1d(x_ncl, to_oik(w1), b1, 1))
    h = jax.nn.relu(conv1d(h, to_oik(w2), b2, 1))
    h = conv1d(h, to_oik(w3), b3, 1)
    h = conv1d(h, w4[:, :, None], b4, 0)
    return h


if __name__ == "__main__":
    key = jax.random.PRNGKey(0)
    k_param, k_x = jax.random.split(key)

    B, L, facies_n = 2, 16, 4
    params = init_params(k_param, facies_n=facies_n)
    x = jax.random.normal(k_x, (B, 1, L), jnp.float32)        # (B, C_in=1, L), as in PyTorch

    ref = jax.block_until_ready(ref_forward(x, params))

    # f32 MXU operands (matches the reference to ~1e-6).
    out = jax.block_until_ready(facies_forward(x, params))
    assert out.shape == (B, facies_n, L)
    assert jnp.allclose(out, ref, atol=5e-3, rtol=5e-3), "f32 kernel mismatch vs reference"

    # bf16 MXU operands with f32 accumulation (good on v5e/v6e/v7x alike).
    out_bf16 = jax.block_until_ready(
        facies_forward(x, params, compute_dtype=jnp.bfloat16))
    assert out_bf16.shape == (B, facies_n, L)
    assert jnp.allclose(out_bf16, ref, atol=1e-1, rtol=1e-1), "bf16 kernel mismatch vs reference"

    # Second shape: exercises batch padding, multiple grid steps and a longer,
    # non-multiple-of-128 trace length.
    B2, L2 = 5, 200
    x2 = jax.random.normal(jax.random.PRNGKey(1), (B2, 1, L2), jnp.float32)
    ref2 = jax.block_until_ready(ref_forward(x2, params))
    out2 = jax.block_until_ready(facies_forward(x2, params))
    assert out2.shape == (B2, facies_n, L2)
    assert jnp.allclose(out2, ref2, atol=5e-3, rtol=5e-3), "multi-step kernel mismatch"

    print("KERNEL_OK")
</pallas_src>

<mosaic_0001>
module attributes {stable_mosaic.version = 11 : i64} {
  func.func @facies_kernel(%arg0: i32, %arg1: memref<1x1x128xf32, #tpu.memory_space<vmem>>, %arg2: memref<3x32x1xf32, #tpu.memory_space<vmem>>, %arg3: memref<32x1xf32, #tpu.memory_space<vmem>>, %arg4: memref<64x96xf32, #tpu.memory_space<vmem>>, %arg5: memref<64x1xf32, #tpu.memory_space<vmem>>, %arg6: memref<128x192xf32, #tpu.memory_space<vmem>>, %arg7: memref<128x1xf32, #tpu.memory_space<vmem>>, %arg8: memref<4x128xf32, #tpu.memory_space<vmem>>, %arg9: memref<4x1xf32, #tpu.memory_space<vmem>>, %arg10: memref<1x4x128xf32, #tpu.memory_space<vmem>>) attributes {dimension_semantics = [#tpu.dimension_semantics<parallel>], iteration_bounds = array<i64: 2>, scalar_prefetch = 0 : i64, scratch_operands = 0 : i64, tpu.core_type = #tpu.core_type<tc>, window_params = [{transform_indices = @transform_0, window_bounds = array<i64: 1, 1, 128>}, {pipeline_mode = #tpu.pipeline_mode<synchronous>, transform_indices = @transform_1, window_bounds = array<i64: 3, 32, 1>}, {pipeline_mode = #tpu.pipeline_mode<synchronous>, transform_indices = @transform_2, window_bounds = array<i64: 32, 1>}, {pipeline_mode = #tpu.pipeline_mode<synchronous>, transform_indices = @transform_3, window_bounds = array<i64: 64, 96>}, {pipeline_mode = #tpu.pipeline_mode<synchronous>, transform_indices = @transform_4, window_bounds = array<i64: 64, 1>}, {pipeline_mode = #tpu.pipeline_mode<synchronous>, transform_indices = @transform_5, window_bounds = array<i64: 128, 192>}, {pipeline_mode = #tpu.pipeline_mode<synchronous>, transform_indices = @transform_6, window_bounds = array<i64: 128, 1>}, {pipeline_mode = #tpu.pipeline_mode<synchronous>, transform_indices = @transform_7, window_bounds = array<i64: 4, 128>}, {pipeline_mode = #tpu.pipeline_mode<synchronous>, transform_indices = @transform_8, window_bounds = array<i64: 4, 1>}, {transform_indices = @transform_9, window_bounds = array<i64: 1, 4, 128>}]} {
    %0 = tpu.iota {dimensions = array<i32: 2>} : vector<1x1x128xi32>
    %c0_i32 = arith.constant 0 : i32
    %1 = vector.broadcast %c0_i32 : i32 to vector<1x1x128xi32>
    %2 = arith.cmpi eq, %0, %1 : vector<1x1x128xi32>
    %c15_i32 = arith.constant 15 : i32
    %3 = vector.broadcast %c15_i32 : i32 to vector<1x1x128xi32>
    %4 = arith.cmpi eq, %0, %3 : vector<1x1x128xi32>
    %c0 = arith.constant 0 : index
    %c0_0 = arith.constant 0 : index
    %c0_1 = arith.constant 0 : index
    %5 = vector.load %arg1[%c0, %c0_0, %c0_1] : memref<1x1x128xf32, #tpu.memory_space<vmem>>, vector<1x1x128xf32>
    %c1_i32 = arith.constant 1 : i32
    %6 = tpu.dynamic_rotate %5 by %c1_i32 dim 2 : vector<1x1x128xf32>, i32 -> vector<1x1x128xf32>
    %cst = arith.constant 0.000000e+00 : f32
    %7 = vector.broadcast %cst : f32 to vector<1x1x128xf32>
    %8 = arith.select %2, %7, %6 : vector<1x1x128xi1>, vector<1x1x128xf32>
    %c127_i32 = arith.constant 127 : i32
    %9 = tpu.dynamic_rotate %5 by %c127_i32 dim 2 : vector<1x1x128xf32>, i32 -> vector<1x1x128xf32>
    %cst_2 = arith.constant 0.000000e+00 : f32
    %10 = vector.broadcast %cst_2 : f32 to vector<1x1x128xf32>
    %11 = arith.select %4, %10, %9 : vector<1x1x128xi1>, vector<1x1x128xf32>
    %c0_3 = arith.constant 0 : index
    %c0_4 = arith.constant 0 : index
    %c0_5 = arith.constant 0 : index
    %12 = vector.load %arg2[%c0_3, %c0_4, %c0_5] : memref<3x32x1xf32, #tpu.memory_space<vmem>>, vector<1x32x1xf32>
    %13 = vector.shape_cast %12 : vector<1x32x1xf32> to vector<32x1xf32>
    %14 = vector.shape_cast %13 : vector<32x1xf32> to vector<1x32x1xf32>
    %15 = vector.broadcast %8 : vector<1x1x128xf32> to vector<1x32x128xf32>
    %16 = vector.broadcast %14 : vector<1x32x1xf32> to vector<1x32x128xf32>
    %17 = arith.mulf %15, %16 : vector<1x32x128xf32>
    %c1 = arith.constant 1 : index
    %c0_6 = arith.constant 0 : index
    %c0_7 = arith.constant 0 : index
    %18 = vector.load %arg2[%c1, %c0_6, %c0_7] : memref<3x32x1xf32, #tpu.memory_space<vmem>>, vector<1x32x1xf32>
    %19 = vector.shape_cast %18 : vector<1x32x1xf32> to vector<32x1xf32>
    %20 = vector.shape_cast %19 : vector<32x1xf32> to vector<1x32x1xf32>
    %21 = vector.broadcast %5 : vector<1x1x128xf32> to vector<1x32x128xf32>
    %22 = vector.broadcast %20 : vector<1x32x1xf32> to vector<1x32x128xf32>
    %23 = arith.mulf %21, %22 : vector<1x32x128xf32>
    %24 = arith.addf %17, %23 : vector<1x32x128xf32>
    %c2 = arith.constant 2 : index
    %c0_8 = arith.constant 0 : index
    %c0_9 = arith.constant 0 : index
    %25 = vector.load %arg2[%c2, %c0_8, %c0_9] : memref<3x32x1xf32, #tpu.memory_space<vmem>>, vector<1x32x1xf32>
    %26 = vector.shape_cast %25 : vector<1x32x1xf32> to vector<32x1xf32>
    %27 = vector.shape_cast %26 : vector<32x1xf32> to vector<1x32x1xf32>
    %28 = vector.broadcast %11 : vector<1x1x128xf32> to vector<1x32x128xf32>
    %29 = vector.broadcast %27 : vector<1x32x1xf32> to vector<1x32x128xf32>
    %30 = arith.mulf %28, %29 : vector<1x32x128xf32>
    %31 = arith.addf %24, %30 : vector<1x32x128xf32>
    %c0_10 = arith.constant 0 : index
    %c0_11 = arith.constant 0 : index
    %32 = vector.load %arg3[%c0_10, %c0_11] : memref<32x1xf32, #tpu.memory_space<vmem>>, vector<32x1xf32>
    %33 = vector.shape_cast %32 : vector<32x1xf32> to vector<1x32x1xf32>
    %34 = vector.broadcast %33 : vector<1x32x1xf32> to vector<1x32x128xf32>
    %35 = arith.addf %31, %34 : vector<1x32x128xf32>
    %cst_12 = arith.constant 0.000000e+00 : f32
    %36 = vector.broadcast %cst_12 : f32 to vector<1x32x128xf32>
    %37 = arith.maximumf %35, %36 : vector<1x32x128xf32>
    %c1_i32_13 = arith.constant 1 : i32
    %38 = tpu.dynamic_rotate %37 by %c1_i32_13 dim 2 : vector<1x32x128xf32>, i32 -> vector<1x32x128xf32>
    %cst_14 = arith.constant 0.000000e+00 : f32
    %39 = vector.shape_cast %2 : vector<1x1x128xi1> to vector<1x1x128xi1>
    %40 = vector.broadcast %39 : vector<1x1x128xi1> to vector<1x32x128xi1>
    %41 = vector.broadcast %cst_14 : f32 to vector<1x32x128xf32>
    %42 = arith.select %40, %41, %38 : vector<1x32x128xi1>, vector<1x32x128xf32>
    %c127_i32_15 = arith.constant 127 : i32
    %43 = tpu.dynamic_rotate %37 by %c127_i32_15 dim 2 : vector<1x32x128xf32>, i32 -> vector<1x32x128xf32>
    %cst_16 = arith.constant 0.000000e+00 : f32
    %44 = vector.shape_cast %4 : vector<1x1x128xi1> to vector<1x1x128xi1>
    %45 = vector.broadcast %44 : vector<1x1x128xi1> to vector<1x32x128xi1>
    %46 = vector.broadcast %cst_16 : f32 to vector<1x32x128xf32>
    %47 = arith.select %45, %46, %43 : vector<1x32x128xi1>, vector<1x32x128xf32>
    %48 = tpu.concatenate %42, %37, %47 in 1 : vector<1x32x128xf32>, vector<1x32x128xf32>, vector<1x32x128xf32> -> vector<1x96x128xf32>
    %c0_17 = arith.constant 0 : index
    %c0_18 = arith.constant 0 : index
    %49 = vector.load %arg4[%c0_17, %c0_18] : memref<64x96xf32, #tpu.memory_space<vmem>>, vector<64x96xf32>
    %50 = vector.shape_cast %49 : vector<64x96xf32> to vector<1x64x96xf32>
    %cst_19 = arith.constant dense<0.000000e+00> : vector<1x64x128xf32>
    %51 = tpu.matmul %50, %48, %cst_19 {dimension_numbers = #tpu.dot_dimension_numbers<[2], [1], [1], [2], [0, 0, 0, 1, 1, 2], [0], [0]>} : vector<1x64x96xf32>, vector<1x96x128xf32>, vector<1x64x128xf32> -> vector<1x64x128xf32>
    %c0_20 = arith.constant 0 : index
    %c0_21 = arith.constant 0 : index
    %52 = vector.load %arg5[%c0_20, %c0_21] : memref<64x1xf32, #tpu.memory_space<vmem>>, vector<64x1xf32>
    %53 = vector.shape_cast %52 : vector<64x1xf32> to vector<1x64x1xf32>
    %54 = vector.broadcast %53 : vector<1x64x1xf32> to vector<1x64x128xf32>
    %55 = arith.addf %51, %54 : vector<1x64x128xf32>
    %cst_22 = arith.constant 0.000000e+00 : f32
    %56 = vector.broadcast %cst_22 : f32 to vector<1x64x128xf32>
    %57 = arith.maximumf %55, %56 : vector<1x64x128xf32>
    %c1_i32_23 = arith.constant 1 : i32
    %58 = tpu.dynamic_rotate %57 by %c1_i32_23 dim 2 : vector<1x64x128xf32>, i32 -> vector<1x64x128xf32>
    %cst_24 = arith.constant 0.000000e+00 : f32
    %59 = vector.shape_cast %2 : vector<1x1x128xi1> to vector<1x1x128xi1>
    %60 = vector.broadcast %59 : vector<1x1x128xi1> to vector<1x64x128xi1>
    %61 = vector.broadcast %cst_24 : f32 to vector<1x64x128xf32>
    %62 = arith.select %60, %61, %58 : vector<1x64x128xi1>, vector<1x64x128xf32>
    %c127_i32_25 = arith.constant 127 : i32
    %63 = tpu.dynamic_rotate %57 by %c127_i32_25 dim 2 : vector<1x64x128xf32>, i32 -> vector<1x64x128xf32>
    %cst_26 = arith.constant 0.000000e+00 : f32
    %64 = vector.shape_cast %4 : vector<1x1x128xi1> to vector<1x1x128xi1>
    %65 = vector.broadcast %64 : vector<1x1x128xi1> to vector<1x64x128xi1>
    %66 = vector.broadcast %cst_26 : f32 to vector<1x64x128xf32>
    %67 = arith.select %65, %66, %63 : vector<1x64x128xi1>, vector<1x64x128xf32>
    %68 = tpu.concatenate %62, %57, %67 in 1 : vector<1x64x128xf32>, vector<1x64x128xf32>, vector<1x64x128xf32> -> vector<1x192x128xf32>
    %c0_27 = arith.constant 0 : index
    %c0_28 = arith.constant 0 : index
    %69 = vector.load %arg6[%c0_27, %c0_28] : memref<128x192xf32, #tpu.memory_space<vmem>>, vector<128x192xf32>
    %70 = vector.shape_cast %69 : vector<128x192xf32> to vector<1x128x192xf32>
    %cst_29 = arith.constant dense<0.000000e+00> : vector<1x128x128xf32>
    %71 = tpu.matmul %70, %68, %cst_29 {dimension_numbers = #tpu.dot_dimension_numbers<[2], [1], [1], [2], [0, 0, 0, 1, 1, 2], [0], [0]>} : vector<1x128x192xf32>, vector<1x192x128xf32>, vector<1x128x128xf32> -> vector<1x128x128xf32>
    %c0_30 = arith.constant 0 : index
    %c0_31 = arith.constant 0 : index
    %72 = vector.load %arg7[%c0_30, %c0_31] : memref<128x1xf32, #tpu.memory_space<vmem>>, vector<128x1xf32>
    %73 = vector.shape_cast %72 : vector<128x1xf32> to vector<1x128x1xf32>
    %74 = vector.broadcast %73 : vector<1x128x1xf32> to vector<1x128x128xf32>
    %75 = arith.addf %71, %74 : vector<1x128x128xf32>
    %c0_32 = arith.constant 0 : index
    %c0_33 = arith.constant 0 : index
    %76 = vector.load %arg8[%c0_32, %c0_33] : memref<4x128xf32, #tpu.memory_space<vmem>>, vector<4x128xf32>
    %77 = vector.shape_cast %76 : vector<4x128xf32> to vector<1x4x128xf32>
    %cst_34 = arith.constant dense<0.000000e+00> : vector<1x4x128xf32>
    %78 = tpu.matmul %77, %75, %cst_34 {dimension_numbers = #tpu.dot_dimension_numbers<[2], [1], [1], [2], [0, 0, 0, 1, 1, 2], [0], [0]>} : vector<1x4x128xf32>, vector<1x128x128xf32>, vector<1x4x128xf32> -> vector<1x4x128xf32>
    %c0_35 = arith.constant 0 : index
    %c0_36 = arith.constant 0 : index
    %79 = vector.load %arg9[%c0_35, %c0_36] : memref<4x1xf32, #tpu.memory_space<vmem>>, vector<4x1xf32>
    %80 = vector.shape_cast %79 : vector<4x1xf32> to vector<1x4x1xf32>
    %81 = vector.broadcast %80 : vector<1x4x1xf32> to vector<1x4x128xf32>
    %82 = arith.addf %78, %81 : vector<1x4x128xf32>
    %c0_37 = arith.constant 0 : index
    %c0_38 = arith.constant 0 : index
    %c0_39 = arith.constant 0 : index
    %83 = vector.load %arg10[%c0_37, %c0_38, %c0_39] : memref<1x4x128xf32, #tpu.memory_space<vmem>>, vector<1x4x128xf32>
    tpu.vector_store %arg10[%c0_37, %c0_38, %c0_39], %82 {strides = array<i32>} : memref<1x4x128xf32, #tpu.memory_space<vmem>>, vector<1x4x128xf32>,
    return
  }
  func.func @transform_0(%arg0: i32) -> (i32, i32, i32) {
    %c0_i32 = arith.constant 0 : i32
    %c0_i32_0 = arith.constant 0 : i32
    %c0_i32_1 = arith.constant 0 : i32
    return %arg0, %c0_i32, %c0_i32_0 : i32, i32, i32
  }
  func.func @transform_1(%arg0: i32) -> (i32, i32, i32) {
    %c0_i32 = arith.constant 0 : i32
    %c0_i32_0 = arith.constant 0 : i32
    %c0_i32_1 = arith.constant 0 : i32
    %c0_i32_2 = arith.constant 0 : i32
    return %c0_i32, %c0_i32_0, %c0_i32_1 : i32, i32, i32
  }
  func.func @transform_2(%arg0: i32) -> (i32, i32) {
    %c0_i32 = arith.constant 0 : i32
    %c0_i32_0 = arith.constant 0 : i32
    %c0_i32_1 = arith.constant 0 : i32
    return %c0_i32, %c0_i32_0 : i32, i32
  }
  func.func @transform_3(%arg0: i32) -> (i32, i32) {
    %c0_i32 = arith.constant 0 : i32
    %c0_i32_0 = arith.constant 0 : i32
    %c0_i32_1 = arith.constant 0 : i32
    return %c0_i32, %c0_i32_0 : i32, i32
  }
  func.func @transform_4(%arg0: i32) -> (i32, i32) {
    %c0_i32 = arith.constant 0 : i32
    %c0_i32_0 = arith.constant 0 : i32
    %c0_i32_1 = arith.constant 0 : i32
    return %c0_i32, %c0_i32_0 : i32, i32
  }
  func.func @transform_5(%arg0: i32) -> (i32, i32) {
    %c0_i32 = arith.constant 0 : i32
    %c0_i32_0 = arith.constant 0 : i32
    %c0_i32_1 = arith.constant 0 : i32
    return %c0_i32, %c0_i32_0 : i32, i32
  }
  func.func @transform_6(%arg0: i32) -> (i32, i32) {
    %c0_i32 = arith.constant 0 : i32
    %c0_i32_0 = arith.constant 0 : i32
    %c0_i32_1 = arith.constant 0 : i32
    return %c0_i32, %c0_i32_0 : i32, i32
  }
  func.func @transform_7(%arg0: i32) -> (i32, i32) {
    %c0_i32 = arith.constant 0 : i32
    %c0_i32_0 = arith.constant 0 : i32
    %c0_i32_1 = arith.constant 0 : i32
    return %c0_i32, %c0_i32_0 : i32, i32
  }
  func.func @transform_8(%arg0: i32) -> (i32, i32) {
    %c0_i32 = arith.constant 0 : i32
    %c0_i32_0 = arith.constant 0 : i32
    %c0_i32_1 = arith.constant 0 : i32
    return %c0_i32, %c0_i32_0 : i32, i32
  }
  func.func @transform_9(%arg0: i32) -> (i32, i32, i32) {
    %c0_i32 = arith.constant 0 : i32
    %c0_i32_0 = arith.constant 0 : i32
    %c0_i32_1 = arith.constant 0 : i32
    return %arg0, %c0_i32, %c0_i32_0 : i32, i32, i32
  }
}

</mosaic_0001>

<llo_original>
// kernel: tpu_custom_call.1
$region0: #{tpu_custom_call.1}
  #allocation0 [shape = 'u32[]', space=smem, size = 0x4, offset = 0x4, fixed_abs, tag = 'smem constant byte address 0x4 - core index']
  #allocation1 [shape = 'u32[72,128]{1,0:T(1,128)}', space=vmem, size = 0x9000, scoped, tag = 'internal scratch']
  %s0 = inlined_call_operand.vmem [shape: f32[2,1,128], index: 0, kind: input, shape index: {}]
  %s1 = inlined_call_operand.vmem [shape: f32[3,32,1], index: 1, kind: input, shape index: {}]
  %s2 = inlined_call_operand.vmem [shape: f32[32,1], index: 2, kind: input, shape index: {}]
  %s3 = inlined_call_operand.vmem [shape: f32[64,96], index: 3, kind: input, shape index: {}]
  %s4 = inlined_call_operand.vmem [shape: f32[64,1], index: 4, kind: input, shape index: {}]
  %s5 = inlined_call_operand.vmem [shape: f32[128,192], index: 5, kind: input, shape index: {}]
  %s6 = inlined_call_operand.vmem [shape: f32[128,1], index: 6, kind: input, shape index: {}]
  %s7 = inlined_call_operand.vmem [shape: f32[4,128], index: 7, kind: input, shape index: {}]
  %s8 = inlined_call_operand.vmem [shape: f32[4,1], index: 8, kind: input, shape index: {}]
  %s9 = inlined_call_operand.hbm [shape: f32[2,4,128], index: 9, kind: output, shape index: {}]
  %s10 = sld [smem:[#allocation0]]
  $region69: #{tpu_custom_call.1} parent=0
    _
  %s12 = ssub.s32 1, %s10
  %s13 = scalar_select 0, %s12, %s10
  $region1: #{tpu_custom_call.1} parent=0
    #allocation2 [shape = 'u8[4096]{0}', space=vmem, size = 0x1000, scoped, tag = 'output window, operand 0']
    #allocation3 [shape = 's32[2]{0}', space=sflag, size = 0x8, scoped, tag = 'scoped memory for tpu_custom_call.1']
    %14 = vsyncpa [#allocation3], 0
    %s15 = scalar_lea.sflag [#allocation3], 1
    %16 = vsyncpa %s15, 0
    loop: start=0, step=1, limit=4
    $region2: #{tpu_custom_call.1} parent=1 // loop_pre_header
      _
    $region3: #{tpu_custom_call.1} parent=1 // loop_header
      %s18 = sphi 0, %s22
      %p19 = scmp.ge.s32.totalorder %s18, 4
      %s28 = sphi 0, %s30
      %s31 = sphi 0, %s28
      %s32 = sphi 0, %s31
      %s48 = sphi 0, %s32
      %s52 = sphi 0, %s52
      %s54 = sphi 0, %s52
      %s55 = sphi 0, %s54
      %s69 = sphi 0, %s55
      %s73 = sphi 0, %s73
      %s75 = sphi 0, %s73
      %s76 = sphi 0, %s75
      %s90 = sphi 0, %s76
      %s94 = sphi 0, %s94
      %s96 = sphi 0, %s94
      %s97 = sphi 0, %s96
      %s111 = sphi 0, %s97
      %s115 = sphi 0, %s115
      %s117 = sphi 0, %s115
      %s118 = sphi 0, %s117
      %s132 = sphi 0, %s118
      %s136 = sphi 0, %s136
      %s138 = sphi 0, %s136
      %s139 = sphi 0, %s138
      %s153 = sphi 0, %s139
      %s157 = sphi 0, %s157
      %s159 = sphi 0, %s157
      %s160 = sphi 0, %s159
      %s174 = sphi 0, %s160
      %s178 = sphi 0, %s178
      %s180 = sphi 0, %s178
      %s181 = sphi 0, %s180
      %s195 = sphi 0, %s181
      %s199 = sphi 0, %s199
      %s201 = sphi 0, %s199
      %s202 = sphi 0, %s201
      %s216 = sphi 0, %s202
      %s222 = sphi 0, %s224
      %s225 = sphi 0, %s222
      %s226 = sphi 0, %s225
      %s242 = sphi 0, %s226
    $region4: #{tpu_custom_call.1} parent=1 // loop_header_branch
      %21 = sbr.rel (%p19) target = $region8
    $region5: #{tpu_custom_call.1} parent=1 // loop_body
      %s23 = ssub.s32 %s18, 1
      %s24 = ssub.s32 %s18, 2
      %s25 = sadd.s32 %s18, 1
      %s26 = ssub.s32 %s18, %s25
      %p27 = scmp.eq.s32.totalorder %s26, 0
      %s29 = sadd.s32 %s28, 1
      %s30 = scalar_select %p27, %s28, %s29
      %p33 = pneg %p27
      %p34 = scmp.eq.s32.totalorder %s18, 1
      %p35 = por %p33, %p34
      %p36 = scmp.ne.s32.totalorder %s28, %s31
      %p37 = scmp.eq.s32.totalorder %s18, 0
      %p38 = por %p36, %p37
      %p39 = scmp.ne.s32.totalorder %s28, %s31
      %p40 = scmp.eq.s32.totalorder %s23, 1
      %p41 = por %p39, %p40
      %p42 = scmp.ne.s32.totalorder %s31, %s32
      %p43 = scmp.eq.s32.totalorder %s23, 0
      %p44 = por %p42, %p43
      %p45 = scmp.ne.s32.totalorder %s31, %s32
      %p46 = scmp.eq.s32.totalorder %s24, 1
      %p47 = por %p45, %p46
      %p49 = scmp.ne.s32.totalorder %s32, %s48
      %p50 = scmp.eq.s32.totalorder %s24, 0
      %p51 = por %p49, %p50
      %s53 = sadd.s32 %s52, 1
      %p56 = scmp.eq.s32.totalorder %s18, 1
      %p57 = scmp.ne.s32.totalorder %s52, %s54
      %p58 = scmp.eq.s32.totalorder %s18, 0
      %p59 = por %p57, %p58
      %p60 = scmp.ne.s32.totalorder %s52, %s54
      %p61 = scmp.eq.s32.totalorder %s23, 1
      %p62 = por %p60, %p61
      %p63 = scmp.ne.s32.totalorder %s54, %s55
      %p64 = scmp.eq.s32.totalorder %s23, 0
      %p65 = por %p63, %p64
      %p66 = scmp.ne.s32.totalorder %s54, %s55
      %p67 = scmp.eq.s32.totalorder %s24, 1
      %p68 = por %p66, %p67
      %p70 = scmp.ne.s32.totalorder %s55, %s69
      %p71 = scmp.eq.s32.totalorder %s24, 0
      %p72 = por %p70, %p71
      %s74 = sadd.s32 %s73, 1
      %p77 = scmp.eq.s32.totalorder %s18, 1
      %p78 = scmp.ne.s32.totalorder %s73, %s75
      %p79 = scmp.eq.s32.totalorder %s18, 0
      %p80 = por %p78, %p79
      %p81 = scmp.ne.s32.totalorder %s73, %s75
      %p82 = scmp.eq.s32.totalorder %s23, 1
      %p83 = por %p81, %p82
      %p84 = scmp.ne.s32.totalorder %s75, %s76
      %p85 = scmp.eq.s32.totalorder %s23, 0
      %p86 = por %p84, %p85
      %p87 = scmp.ne.s32.totalorder %s75, %s76
      %p88 = scmp.eq.s32.totalorder %s24, 1
      %p89 = por %p87, %p88
      %p91 = scmp.ne.s32.totalorder %s76, %s90
      %p92 = scmp.eq.s32.totalorder %s24, 0
      %p93 = por %p91, %p92
      %s95 = sadd.s32 %s94, 1
      %p98 = scmp.eq.s32.totalorder %s18, 1
      %p99 = scmp.ne.s32.totalorder %s94, %s96
      %p100 = scmp.eq.s32.totalorder %s18, 0
      %p101 = por %p99, %p100
      %p102 = scmp.ne.s32.totalorder %s94, %s96
      %p103 = scmp.eq.s32.totalorder %s23, 1
      %p104 = por %p102, %p103
      %p105 = scmp.ne.s32.totalorder %s96, %s97
      %p106 = scmp.eq.s32.totalorder %s23, 0
      %p107 = por %p105, %p106
      %p108 = scmp.ne.s32.totalorder %s96, %s97
      %p109 = scmp.eq.s32.totalorder %s24, 1
      %p110 = por %p108, %p109
      %p112 = scmp.ne.s32.totalorder %s97, %s111
      %p113 = scmp.eq.s32.totalorder %s24, 0
      %p114 = por %p112, %p113
      %s116 = sadd.s32 %s115, 1
      %p119 = scmp.eq.s32.totalorder %s18, 1
      %p120 = scmp.ne.s32.totalorder %s115, %s117
      %p121 = scmp.eq.s32.totalorder %s18, 0
      %p122 = por %p120, %p121
      %p123 = scmp.ne.s32.totalorder %s115, %s117
      %p124 = scmp.eq.s32.totalorder %s23, 1
      %p125 = por %p123, %p124
      %p126 = scmp.ne.s32.totalorder %s117, %s118
      %p127 = scmp.eq.s32.totalorder %s23, 0
      %p128 = por %p126, %p127
      %p129 = scmp.ne.s32.totalorder %s117, %s118
      %p130 = scmp.eq.s32.totalorder %s24, 1
      %p131 = por %p129, %p130
      %p133 = scmp.ne.s32.totalorder %s118, %s132
      %p134 = scmp.eq.s32.totalorder %s24, 0
      %p135 = por %p133, %p134
      %s137 = sadd.s32 %s136, 1
      %p140 = scmp.eq.s32.totalorder %s18, 1
      %p141 = scmp.ne.s32.totalorder %s136, %s138
      %p142 = scmp.eq.s32.totalorder %s18, 0
      %p143 = por %p141, %p142
      %p144 = scmp.ne.s32.totalorder %s136, %s138
      %p145 = scmp.eq.s32.totalorder %s23, 1
      %p146 = por %p144, %p145
      %p147 = scmp.ne.s32.totalorder %s138, %s139
      %p148 = scmp.eq.s32.totalorder %s23, 0
      %p149 = por %p147, %p148
      %p150 = scmp.ne.s32.totalorder %s138, %s139
      %p151 = scmp.eq.s32.totalorder %s24, 1
      %p152 = por %p150, %p151
      %p154 = scmp.ne.s32.totalorder %s139, %s153
      %p155 = scmp.eq.s32.totalorder %s24, 0
      %p156 = por %p154, %p155
      %s158 = sadd.s32 %s157, 1
      %p161 = scmp.eq.s32.totalorder %s18, 1
      %p162 = scmp.ne.s32.totalorder %s157, %s159
      %p163 = scmp.eq.s32.totalorder %s18, 0
      %p164 = por %p162, %p163
      %p165 = scmp.ne.s32.totalorder %s157, %s159
      %p166 = scmp.eq.s32.totalorder %s23, 1
      %p167 = por %p165, %p166
      %p168 = scmp.ne.s32.totalorder %s159, %s160
      %p169 = scmp.eq.s32.totalorder %s23, 0
      %p170 = por %p168, %p169
      %p171 = scmp.ne.s32.totalorder %s159, %s160
      %p172 = scmp.eq.s32.totalorder %s24, 1
      %p173 = por %p171, %p172
      %p175 = scmp.ne.s32.totalorder %s160, %s174
      %p176 = scmp.eq.s32.totalorder %s24, 0
      %p177 = por %p175, %p176
      %s179 = sadd.s32 %s178, 1
      %p182 = scmp.eq.s32.totalorder %s18, 1
      %p183 = scmp.ne.s32.totalorder %s178, %s180
      %p184 = scmp.eq.s32.totalorder %s18, 0
      %p185 = por %p183, %p184
      %p186 = scmp.ne.s32.totalorder %s178, %s180
      %p187 = scmp.eq.s32.totalorder %s23, 1
      %p188 = por %p186, %p187
      %p189 = scmp.ne.s32.totalorder %s180, %s181
      %p190 = scmp.eq.s32.totalorder %s23, 0
      %p191 = por %p189, %p190
      %p192 = scmp.ne.s32.totalorder %s180, %s181
      %p193 = scmp.eq.s32.totalorder %s24, 1
      %p194 = por %p192, %p193
      %p196 = scmp.ne.s32.totalorder %s181, %s195
      %p197 = scmp.eq.s32.totalorder %s24, 0
      %p198 = por %p196, %p197
      %s200 = sadd.s32 %s199, 1
      %p203 = scmp.eq.s32.totalorder %s18, 1
      %p204 = scmp.ne.s32.totalorder %s199, %s201
      %p205 = scmp.eq.s32.totalorder %s18, 0
      %p206 = por %p204, %p205
      %p207 = scmp.ne.s32.totalorder %s199, %s201
      %p208 = scmp.eq.s32.totalorder %s23, 1
      %p209 = por %p207, %p208
      %p210 = scmp.ne.s32.totalorder %s201, %s202
      %p211 = scmp.eq.s32.totalorder %s23, 0
      %p212 = por %p210, %p211
      %p213 = scmp.ne.s32.totalorder %s201, %s202
      %p214 = scmp.eq.s32.totalorder %s24, 1
      %p215 = por %p213, %p214
      %p217 = scmp.ne.s32.totalorder %s202, %s216
      %p218 = scmp.eq.s32.totalorder %s24, 0
      %p219 = por %p217, %p218
      %s220 = ssub.s32 %s18, %s25
      %p221 = scmp.eq.s32.totalorder %s220, 0
      %s223 = sadd.s32 %s222, 1
      %s224 = scalar_select %p221, %s222, %s223
      %p227 = pneg %p221
      %p228 = scmp.eq.s32.totalorder %s18, 1
      %p229 = por %p227, %p228
      %p230 = scmp.ne.s32.totalorder %s222, %s225
      %p231 = scmp.eq.s32.totalorder %s18, 0
      %p232 = por %p230, %p231
      %p233 = scmp.ne.s32.totalorder %s222, %s225
      %p234 = scmp.eq.s32.totalorder %s23, 1
      %p235 = por %p233, %p234
      %p236 = scmp.ne.s32.totalorder %s225, %s226
      %p237 = scmp.eq.s32.totalorder %s23, 0
      %p238 = por %p236, %p237
      %p239 = scmp.ne.s32.totalorder %s225, %s226
      %p240 = scmp.eq.s32.totalorder %s24, 1
      %p241 = por %p239, %p240
      %p243 = scmp.ne.s32.totalorder %s226, %s242
      %p244 = scmp.eq.s32.totalorder %s24, 0
      %p245 = por %p243, %p244
      %p246 = scmp.le.s32.totalorder 1, %s18
      %p247 = scmp.lt.s32.totalorder %s18, 3
      %p248 = pnand %p246, %p247
      %p249 = pneg %p248
      // Predicated region
      $region9: #{tpu_custom_call.1} parent=5 // pred_check
        _
      $region10: #{tpu_custom_call.1} parent=5 // pred_check_branch
        %251 = sbr.rel (%p248) target = $region12
      $region11: #{tpu_custom_call.1} parent=5 // pred_region
        %s252 = ssub.s32 %s18, 1
        // Predicated region
        $region13: #{tpu_custom_call.1} parent=11 // pred_check
          %p253 = pneg %p65
        $region14: #{tpu_custom_call.1} parent=11 // pred_check_branch
          %255 = sbr.rel (%p253) target = $region16
        $region15: #{tpu_custom_call.1} parent=11 // pred_region
          _
        $region16: #{tpu_custom_call.1} parent=11 // pred_fallthru
          _
        // Predicated region
        $region17: #{tpu_custom_call.1} parent=11 // pred_check
          %p256 = pneg %p86
        $region18: #{tpu_custom_call.1} parent=11 // pred_check_branch
          %258 = sbr.rel (%p256) target = $region20
        $region19: #{tpu_custom_call.1} parent=11 // pred_region
          _
        $region20: #{tpu_custom_call.1} parent=11 // pred_fallthru
          _
        // Predicated region
        $region21: #{tpu_custom_call.1} parent=11 // pred_check
          %p259 = pneg %p107
        $region22: #{tpu_custom_call.1} parent=11 // pred_check_branch
          %261 = sbr.rel (%p259) target = $region24
        $region23: #{tpu_custom_call.1} parent=11 // pred_region
          _
        $region24: #{tpu_custom_call.1} parent=11 // pred_fallthru
          _
        // Predicated region
        $region25: #{tpu_custom_call.1} parent=11 // pred_check
          %p262 = pneg %p128
        $region26: #{tpu_custom_call.1} parent=11 // pred_check_branch
          %264 = sbr.rel (%p262) target = $region28
        $region27: #{tpu_custom_call.1} parent=11 // pred_region
          _
        $region28: #{tpu_custom_call.1} parent=11 // pred_fallthru
          _
        // Predicated region
        $region29: #{tpu_custom_call.1} parent=11 // pred_check
          %p265 = pneg %p149
        $region30: #{tpu_custom_call.1} parent=11 // pred_check_branch
          %267 = sbr.rel (%p265) target = $region32
        $region31: #{tpu_custom_call.1} parent=11 // pred_region
          _
        $region32: #{tpu_custom_call.1} parent=11 // pred_fallthru
          _
        // Predicated region
        $region33: #{tpu_custom_call.1} parent=11 // pred_check
          %p268 = pneg %p170
        $region34: #{tpu_custom_call.1} parent=11 // pred_check_branch
          %270 = sbr.rel (%p268) target = $region36
        $region35: #{tpu_custom_call.1} parent=11 // pred_region
          _
        $region36: #{tpu_custom_call.1} parent=11 // pred_fallthru
          _
        // Predicated region
        $region37: #{tpu_custom_call.1} parent=11 // pred_check
          %p271 = pneg %p191
        $region38: #{tpu_custom_call.1} parent=11 // pred_check_branch
          %273 = sbr.rel (%p271) target = $region40
        $region39: #{tpu_custom_call.1} parent=11 // pred_region
          _
        $region40: #{tpu_custom_call.1} parent=11 // pred_fallthru
          _
        // Predicated region
        $region41: #{tpu_custom_call.1} parent=11 // pred_check
          %p274 = pneg %p212
        $region42: #{tpu_custom_call.1} parent=11 // pred_check_branch
          %276 = sbr.rel (%p274) target = $region44
        $region43: #{tpu_custom_call.1} parent=11 // pred_region
          _
        $region44: #{tpu_custom_call.1} parent=11 // pred_fallthru
          _
      $region12: #{tpu_custom_call.1} parent=5 // pred_fallthru
        _
      %p277 = scmp.lt.s32.totalorder %s18, 2
      // Predicated region
      $region45: #{tpu_custom_call.1} parent=5 // pred_check
        %p278 = pneg %p277
      $region46: #{tpu_custom_call.1} parent=5 // pred_check_branch
        %280 = sbr.rel (%p278) target = $region48
      $region47: #{tpu_custom_call.1} parent=5 // pred_region
        // Predicated region
        $region49: #{tpu_custom_call.1} parent=47 // pred_check
          %p281 = pneg %p38
        $region50: #{tpu_custom_call.1} parent=47 // pred_check_branch
          %283 = sbr.rel (%p281) target = $region52
        $region51: #{tpu_custom_call.1} parent=47 // pred_region
          %p284 = scmp.lt.s32.totalorder %s18, 1
          %s285 = scalar_select %p284, %s18, 1
          %s286 = scalar_lea.vmem %s0, %s285
        $region52: #{tpu_custom_call.1} parent=47 // pred_fallthru
          _
      $region48: #{tpu_custom_call.1} parent=5 // pred_fallthru
        _
      %p287 = scmp.le.s32.totalorder 1, %s18
      %p288 = scmp.lt.s32.totalorder %s18, 3
      %p289 = pnand %p287, %p288
      %p290 = pneg %p289
      // Predicated region
      $region53: #{tpu_custom_call.1} parent=5 // pred_check
        _
      $region54: #{tpu_custom_call.1} parent=5 // pred_check_branch
        %292 = sbr.rel (%p289) target = $region56
      $region55: #{tpu_custom_call.1} parent=5 // pred_region
        %s293 = ssub.s32 %s18, 1
        %p294 = scmp.lt.s32.totalorder %s23, 1
        %s295 = scalar_select %p294, %s23, 1
        %s296 = scalar_lea.vmem %s0, %s295
        %p297 = pneg %p44
        %p298 = pneg %p41
        %p299 = pneg %p65
        %p300 = pneg %p62
        %p301 = pneg %p86
        %p302 = pneg %p83
        %p303 = pneg %p107
        %p304 = pneg %p104
        %p305 = pneg %p128
        %p306 = pneg %p125
        %p307 = pneg %p149
        %p308 = pneg %p146
        %p309 = pneg %p170
        %p310 = pneg %p167
        %p311 = pneg %p191
        %p312 = pneg %p188
        %p313 = pneg %p212
        %p314 = pneg %p209
        %p315 = pneg %p238
        %p316 = pneg %p235
        %s317 = sand.u32 %s225, 1
        %s318 = scalar_lea.sflag [#allocation3], %s317
        %s319 = sand.u32 %s225, 1
        %s320 = smul.addr %s319, 4
        %s321 = scalar_lea.vmem [#allocation2], %s320
        %p322 = scmp.lt.s32.totalorder %s23, 1
        %s323 = scalar_select %p322, %s23, 1
        %s324 = scalar_lea.vmem %s0, %s323
        %v325 = vlaneseq
        %v326 = vand.u32 %v325, 127
        %vm327 = vcmp.eq.s32.totalorder %v326, 0
        %vm328 = vcmp.eq.s32.totalorder %v326, 15
        %v329 = vld [vmem:[%s324] sm:$0x1]
        %330 = vrot.lane.b32.xlu0 %v329, 1
        %v331 = vpop.permute.xlu0 %330
        %v332 = vsel %vm327, 0.0, %v331
        %333 = vrot.lane.b32.xlu0 %v329, 127
        %v334 = vpop.permute.xlu0 %333
        %v335 = vsel %vm328, 0.0, %v334
        %v336 = vld [vmem:[%s1] sm:$0xff]
        %v337 = vld [vmem:[%s1 + $0x8] sm:$0xff]
        %v338 = vld [vmem:[%s1 + $0x10] sm:$0xff]
        %v339 = vld [vmem:[%s1 + $0x18] sm:$0xff]
        %v340 = vperm.slane %v332, 0
        %342 = vset.pattern.permute.xlu0 0
        %343 = vperm.xlu0 %342, %v336
        %v344 = vpop.permute.xlu0 %343
        %347 = vset.pattern.permute.xlu0 0
        %348 = vperm.xlu0 %347, %v337
        %v349 = vpop.permute.xlu0 %348
        %352 = vset.pattern.permute.xlu0 0
        %353 = vperm.xlu0 %352, %v338
        %v354 = vpop.permute.xlu0 %353
        %357 = vset.pattern.permute.xlu0 0
        %358 = vperm.xlu0 %357, %v339
        %v359 = vpop.permute.xlu0 %358
        %v361 = vmul.f32 %v340, %v344
        %v362 = vmul.f32 %v340, %v349
        %v363 = vmul.f32 %v340, %v354
        %v364 = vmul.f32 %v340, %v359
        %s365 = scalar_lea.vmem %s1, 32
        %v366 = vld [vmem:[%s365] sm:$0xff]
        %v367 = vld [vmem:[%s365 + $0x8] sm:$0xff]
        %v368 = vld [vmem:[%s365 + $0x10] sm:$0xff]
        %v369 = vld [vmem:[%s365 + $0x18] sm:$0xff]
        %v371 = vperm.slane %v329, 0
        %374 = vset.pattern.permute.xlu0 0
        %375 = vperm.xlu0 %374, %v366
        %v376 = vpop.permute.xlu0 %375
        %379 = vset.pattern.permute.xlu0 0
        %380 = vperm.xlu0 %379, %v367
        %v381 = vpop.permute.xlu0 %380
        %384 = vset.pattern.permute.xlu0 0
        %385 = vperm.xlu0 %384, %v368
        %v386 = vpop.permute.xlu0 %385
        %389 = vset.pattern.permute.xlu0 0
        %390 = vperm.xlu0 %389, %v369
        %v391 = vpop.permute.xlu0 %390
        %v393 = vmul.f32 %v371, %v376
        %v394 = vmul.f32 %v371, %v381
        %v395 = vmul.f32 %v371, %v386
        %v396 = vmul.f32 %v371, %v391
        %v397 = vadd.f32 %v361, %v393
        %v398 = vadd.f32 %v362, %v394
        %v399 = vadd.f32 %v363, %v395
        %v400 = vadd.f32 %v364, %v396
        %s401 = scalar_lea.vmem %s1, 64
        %v402 = vld [vmem:[%s401] sm:$0xff]
        %v403 = vld [vmem:[%s401 + $0x8] sm:$0xff]
        %v404 = vld [vmem:[%s401 + $0x10] sm:$0xff]
        %v405 = vld [vmem:[%s401 + $0x18] sm:$0xff]
        %v406 = vperm.slane %v335, 0
        %408 = vset.pattern.permute.xlu0 0
        %409 = vperm.xlu0 %408, %v402
        %v410 = vpop.permute.xlu0 %409
        %413 = vset.pattern.permute.xlu0 0
        %414 = vperm.xlu0 %413, %v403
        %v415 = vpop.permute.xlu0 %414
        %418 = vset.pattern.permute.xlu0 0
        %419 = vperm.xlu0 %418, %v404
        %v420 = vpop.permute.xlu0 %419
        %423 = vset.pattern.permute.xlu0 0
        %424 = vperm.xlu0 %423, %v405
        %v425 = vpop.permute.xlu0 %424
        %v427 = vmul.f32 %v406, %v410
        %v428 = vmul.f32 %v406, %v415
        %v429 = vmul.f32 %v406, %v420
        %v430 = vmul.f32 %v406, %v425
        %v431 = vadd.f32 %v397, %v427
        %v432 = vadd.f32 %v398, %v428
        %v433 = vadd.f32 %v399, %v429
        %v434 = vadd.f32 %v400, %v430
        %v435 = vld [vmem:[%s2] sm:$0xff]
        %v436 = vld [vmem:[%s2 + $0x8] sm:$0xff]
        %v437 = vld [vmem:[%s2 + $0x10] sm:$0xff]
        %v438 = vld [vmem:[%s2 + $0x18] sm:$0xff]
        %440 = vset.pattern.permute.xlu0 0
        %441 = vperm.xlu0 %440, %v435
        %v442 = vpop.permute.xlu0 %441
        %445 = vset.pattern.permute.xlu0 0
        %446 = vperm.xlu0 %445, %v436
        %v447 = vpop.permute.xlu0 %446
        %450 = vset.pattern.permute.xlu0 0
        %451 = vperm.xlu0 %450, %v437
        %v452 = vpop.permute.xlu0 %451
        %455 = vset.pattern.permute.xlu0 0
        %456 = vperm.xlu0 %455, %v438
        %v457 = vpop.permute.xlu0 %456
        %v459 = vadd.f32 %v431, %v442
        %v460 = vadd.f32 %v432, %v447
        %v461 = vadd.f32 %v433, %v452
        %v462 = vadd.f32 %v434, %v457
        %v463 = vmax.f32 %v459, 0.0
        %v464 = vmax.f32 %v460, 0.0
        %v465 = vmax.f32 %v461, 0.0
        %v466 = vmax.f32 %v462, 0.0
        %467 = vrot.lane.b32.xlu0 %v463, 1
        %v468 = vpop.permute.xlu0 %467
        %469 = vrot.lane.b32.xlu0 %v464, 1
        %v470 = vpop.permute.xlu0 %469
        %471 = vrot.lane.b32.xlu0 %v465, 1
        %v472 = vpop.permute.xlu0 %471
        %473 = vrot.lane.b32.xlu0 %v466, 1
        %v474 = vpop.permute.xlu0 %473
        %v475 = vsel %vm327, 1, 0
        %vm476 = vcmp.eq.s32.totalorder %v475, 1
        %v477 = vsel %vm476, 0.0, %v468
        %v478 = vsel %vm476, 0.0, %v470
        %v479 = vsel %vm476, 0.0, %v472
        %v480 = vsel %vm476, 0.0, %v474
        %481 = vrot.lane.b32.xlu0 %v463, 127
        %v482 = vpop.permute.xlu0 %481
        %483 = vrot.lane.b32.xlu0 %v464, 127
        %v484 = vpop.permute.xlu0 %483
        %485 = vrot.lane.b32.xlu0 %v465, 127
        %v486 = vpop.permute.xlu0 %485
        %487 = vrot.lane.b32.xlu0 %v466, 127
        %v488 = vpop.permute.xlu0 %487
        %v489 = vsel %vm328, 1, 0
        %vm490 = vcmp.eq.s32.totalorder %v489, 1
        %v491 = vsel %vm490, 0.0, %v482
        %v492 = vsel %vm490, 0.0, %v484
        %v493 = vsel %vm490, 0.0, %v486
        %v494 = vsel %vm490, 0.0, %v488
        %v495 = vld [vmem:[%s3] sm:$0xff]
        %v496 = vld [vmem:[%s3 + $0x8] sm:$0xff]
        %v497 = vld [vmem:[%s3 + $0x10] sm:$0xff]
        %v498 = vld [vmem:[%s3 + $0x18] sm:$0xff]
        %v499 = vld [vmem:[%s3 + $0x20] sm:$0xff]
        %v500 = vld [vmem:[%s3 + $0x28] sm:$0xff]
        %v501 = vld [vmem:[%s3 + $0x30] sm:$0xff]
        %v502 = vld [vmem:[%s3 + $0x38] sm:$0xff]
        %v503 = vld [vmem:[%s4] sm:$0xff]
        %v504 = vld [vmem:[%s4 + $0x8] sm:$0xff]
        %v505 = vld [vmem:[%s4 + $0x10] sm:$0xff]
        %v506 = vld [vmem:[%s4 + $0x18] sm:$0xff]
        %v507 = vld [vmem:[%s4 + $0x20] sm:$0xff]
        %v508 = vld [vmem:[%s4 + $0x28] sm:$0xff]
        %v509 = vld [vmem:[%s4 + $0x30] sm:$0xff]
        %v510 = vld [vmem:[%s4 + $0x38] sm:$0xff]
        %512 = vset.pattern.permute.xlu0 0
        %513 = vperm.xlu0 %512, %v503
        %v514 = vpop.permute.xlu0 %513
        %517 = vset.pattern.permute.xlu0 0
        %518 = vperm.xlu0 %517, %v504
        %v519 = vpop.permute.xlu0 %518
        %522 = vset.pattern.permute.xlu0 0
        %523 = vperm.xlu0 %522, %v505
        %v524 = vpop.permute.xlu0 %523
        %527 = vset.pattern.permute.xlu0 0
        %528 = vperm.xlu0 %527, %v506
        %v529 = vpop.permute.xlu0 %528
        %532 = vset.pattern.permute.xlu0 0
        %533 = vperm.xlu0 %532, %v507
        %v534 = vpop.permute.xlu0 %533
        %537 = vset.pattern.permute.xlu0 0
        %538 = vperm.xlu0 %537, %v508
        %v539 = vpop.permute.xlu0 %538
        %542 = vset.pattern.permute.xlu0 0
        %543 = vperm.xlu0 %542, %v509
        %v544 = vpop.permute.xlu0 %543
        %547 = vset.pattern.permute.xlu0 0
        %548 = vperm.xlu0 %547, %v510
        %v549 = vpop.permute.xlu0 %548
        %vm551 = vcmask 785408
        %v553 = vsel %vm551, %v495, 0
        %v556 = vsel %vm551, %v496, 0
        %v559 = vsel %vm551, %v497, 0
        %v562 = vsel %vm551, %v498, 0
        %v565 = vsel %vm551, %v499, 0
        %v568 = vsel %vm551, %v500, 0
        %v571 = vsel %vm551, %v501, 0
        %v574 = vsel %vm551, %v502, 0
        %576 = vmatpush.msra.mxu0 0.0
        %577 = vmatpush.msra.mxu0 0.0
        %578 = vmatpush.msra.mxu0 0.0
        %579 = vmatpush.msra.mxu0 0.0
        %580 = vmatpush.msra.mxu0 %v494
        %581 = vmatpush.msra.mxu0 %v493
        %582 = vmatpush.msra.mxu0 %v492
        %583 = vmatpush.msra.mxu0 %v491
        %584 = vmatpush.msra.mxu0 %v466
        %585 = vmatpush.msra.mxu0 %v465
        %586 = vmatpush.msra.mxu0 %v464
        %587 = vmatpush.msra.mxu0 %v463
        %588 = vmatpush.msra.mxu0 %v480
        %589 = vmatpush.msra.mxu0 %v479
        %590 = vmatpush.msra.mxu0 %v478
        %591 = vmatpush.msra.mxu0 %v477
        %592 = vmatmul.f32.gmra.mxu0 %v553
        %v593 = vpop.f32.mrf.mxu0
        %v594 = vadd.f32 %v514, %v593
        %595 = vmatmul.f32.gmra.mxu0 %v556
        %v596 = vpop.f32.mrf.mxu0
        %v597 = vadd.f32 %v519, %v596
        %598 = vmatmul.f32.gmra.mxu0 %v559
        %v599 = vpop.f32.mrf.mxu0
        %v600 = vadd.f32 %v524, %v599
        %601 = vmatmul.f32.gmra.mxu0 %v562
        %v602 = vpop.f32.mrf.mxu0
        %v603 = vadd.f32 %v529, %v602
        %604 = vmatmul.f32.gmra.mxu0 %v565
        %v605 = vpop.f32.mrf.mxu0
        %v606 = vadd.f32 %v534, %v605
        %607 = vmatmul.f32.gmra.mxu0 %v568
        %v608 = vpop.f32.mrf.mxu0
        %v609 = vadd.f32 %v539, %v608
        %610 = vmatmul.f32.gmra.mxu0 %v571
        %v611 = vpop.f32.mrf.mxu0
        %v612 = vadd.f32 %v544, %v611
        %613 = vmatmul.f32.gmra.mxu0 %v574
        %v614 = vpop.f32.mrf.mxu0
        %v615 = vadd.f32 %v549, %v614
        %616 = vdwg.mxu0
        %v617 = vmax.f32 %v594, 0.0
        %v618 = vmax.f32 %v597, 0.0
        %v619 = vmax.f32 %v600, 0.0
        %v620 = vmax.f32 %v603, 0.0
        %v621 = vmax.f32 %v606, 0.0
        %v622 = vmax.f32 %v609, 0.0
        %v623 = vmax.f32 %v612, 0.0
        %v624 = vmax.f32 %v615, 0.0
        %625 = vrot.lane.b32.xlu0 %v617, 1
        %v626 = vpop.permute.xlu0 %625
        %627 = vrot.lane.b32.xlu0 %v618, 1
        %v628 = vpop.permute.xlu0 %627
        %629 = vrot.lane.b32.xlu0 %v619, 1
        %v630 = vpop.permute.xlu0 %629
        %631 = vrot.lane.b32.xlu0 %v620, 1
        %v632 = vpop.permute.xlu0 %631
        %633 = vrot.lane.b32.xlu0 %v621, 1
        %v634 = vpop.permute.xlu0 %633
        %635 = vrot.lane.b32.xlu0 %v622, 1
        %v636 = vpop.permute.xlu0 %635
        %637 = vrot.lane.b32.xlu0 %v623, 1
        %v638 = vpop.permute.xlu0 %637
        %639 = vrot.lane.b32.xlu0 %v624, 1
        %v640 = vpop.permute.xlu0 %639
        %v641 = vsel %vm476, 0.0, %v626
        %v642 = vsel %vm476, 0.0, %v628
        %v643 = vsel %vm476, 0.0, %v630
        %v644 = vsel %vm476, 0.0, %v632
        %v645 = vsel %vm476, 0.0, %v634
        %v646 = vsel %vm476, 0.0, %v636
        %v647 = vsel %vm476, 0.0, %v638
        %v648 = vsel %vm476, 0.0, %v640
        %649 = vrot.lane.b32.xlu0 %v617, 127
        %v650 = vpop.permute.xlu0 %649
        %651 = vrot.lane.b32.xlu0 %v618, 127
        %v652 = vpop.permute.xlu0 %651
        %653 = vrot.lane.b32.xlu0 %v619, 127
        %v654 = vpop.permute.xlu0 %653
        %655 = vrot.lane.b32.xlu0 %v620, 127
        %v656 = vpop.permute.xlu0 %655
        %657 = vrot.lane.b32.xlu0 %v621, 127
        %v658 = vpop.permute.xlu0 %657
        %659 = vrot.lane.b32.xlu0 %v622, 127
        %v660 = vpop.permute.xlu0 %659
        %661 = vrot.lane.b32.xlu0 %v623, 127
        %v662 = vpop.permute.xlu0 %661
        %663 = vrot.lane.b32.xlu0 %v624, 127
        %v664 = vpop.permute.xlu0 %663
        %v665 = vsel %vm490, 0.0, %v650
        %v666 = vsel %vm490, 0.0, %v652
        %v667 = vsel %vm490, 0.0, %v654
        %v668 = vsel %vm490, 0.0, %v656
        %v669 = vsel %vm490, 0.0, %v658
        %v670 = vsel %vm490, 0.0, %v660
        %v671 = vsel %vm490, 0.0, %v662
        %v672 = vsel %vm490, 0.0, %v664
        %v673 = vld [vmem:[%s5] sm:$0xff]
        %v674 = vld [vmem:[%s5 + $0x8] sm:$0xff]
        %v675 = vld [vmem:[%s5 + $0x10] sm:$0xff]
        %v676 = vld [vmem:[%s5 + $0x18] sm:$0xff]
        %v677 = vld [vmem:[%s5 + $0x20] sm:$0xff]
        %v678 = vld [vmem:[%s5 + $0x28] sm:$0xff]
        %v679 = vld [vmem:[%s5 + $0x30] sm:$0xff]
        %v680 = vld [vmem:[%s5 + $0x38] sm:$0xff]
        %v681 = vld [vmem:[%s5 + $0x40] sm:$0xff]
        %v682 = vld [vmem:[%s5 + $0x48] sm:$0xff]
        %v683 = vld [vmem:[%s5 + $0x50] sm:$0xff]
        %v684 = vld [vmem:[%s5 + $0x58] sm:$0xff]
        %v685 = vld [vmem:[%s5 + $0x60] sm:$0xff]
        %v686 = vld [vmem:[%s5 + $0x68] sm:$0xff]
        %v687 = vld [vmem:[%s5 + $0x70] sm:$0xff]
        %v688 = vld [vmem:[%s5 + $0x78] sm:$0xff]
        %v689 = vld [vmem:[%s5 + $0x80] sm:$0xff]
        %v690 = vld [vmem:[%s5 + $0x88] sm:$0xff]
        %v691 = vld [vmem:[%s5 + $0x90] sm:$0xff]
        %v692 = vld [vmem:[%s5 + $0x98] sm:$0xff]
        %v693 = vld [vmem:[%s5 + $0xa0] sm:$0xff]
        %v694 = vld [vmem:[%s5 + $0xa8] sm:$0xff]
        %v695 = vld [vmem:[%s5 + $0xb0] sm:$0xff]
        %v696 = vld [vmem:[%s5 + $0xb8] sm:$0xff]
        %v697 = vld [vmem:[%s5 + $0xc0] sm:$0xff]
        %v698 = vld [vmem:[%s5 + $0xc8] sm:$0xff]
        %v699 = vld [vmem:[%s5 + $0xd0] sm:$0xff]
        %v700 = vld [vmem:[%s5 + $0xd8] sm:$0xff]
        %v701 = vld [vmem:[%s5 + $0xe0] sm:$0xff]
        %v702 = vld [vmem:[%s5 + $0xe8] sm:$0xff]
        %v703 = vld [vmem:[%s5 + $0xf0] sm:$0xff]
        %v704 = vld [vmem:[%s5 + $0xf8] sm:$0xff]
        %v705 = vld [vmem:[%s6] sm:$0xff]
        %v706 = vld [vmem:[%s6 + $0x8] sm:$0xff]
        %v707 = vld [vmem:[%s6 + $0x10] sm:$0xff]
        %v708 = vld [vmem:[%s6 + $0x18] sm:$0xff]
        %v709 = vld [vmem:[%s6 + $0x20] sm:$0xff]
        %v710 = vld [vmem:[%s6 + $0x28] sm:$0xff]
        %v711 = vld [vmem:[%s6 + $0x30] sm:$0xff]
        %v712 = vld [vmem:[%s6 + $0x38] sm:$0xff]
        %v713 = vld [vmem:[%s6 + $0x40] sm:$0xff]
        %v714 = vld [vmem:[%s6 + $0x48] sm:$0xff]
        %v715 = vld [vmem:[%s6 + $0x50] sm:$0xff]
        %v716 = vld [vmem:[%s6 + $0x58] sm:$0xff]
        %v717 = vld [vmem:[%s6 + $0x60] sm:$0xff]
        %v718 = vld [vmem:[%s6 + $0x68] sm:$0xff]
        %v719 = vld [vmem:[%s6 + $0x70] sm:$0xff]
        %v720 = vld [vmem:[%s6 + $0x78] sm:$0xff]
        %722 = vset.pattern.permute.xlu0 0
        %723 = vperm.xlu0 %722, %v705
        %v724 = vpop.permute.xlu0 %723
        %727 = vset.pattern.permute.xlu0 0
        %728 = vperm.xlu0 %727, %v706
        %v729 = vpop.permute.xlu0 %728
        %732 = vset.pattern.permute.xlu0 0
        %733 = vperm.xlu0 %732, %v707
        %v734 = vpop.permute.xlu0 %733
        %737 = vset.pattern.permute.xlu0 0
        %738 = vperm.xlu0 %737, %v708
        %v739 = vpop.permute.xlu0 %738
        %742 = vset.pattern.permute.xlu0 0
        %743 = vperm.xlu0 %742, %v709
        %v744 = vpop.permute.xlu0 %743
        %747 = vset.pattern.permute.xlu0 0
        %748 = vperm.xlu0 %747, %v710
        %v749 = vpop.permute.xlu0 %748
        %752 = vset.pattern.permute.xlu0 0
        %753 = vperm.xlu0 %752, %v711
        %v754 = vpop.permute.xlu0 %753
        %757 = vset.pattern.permute.xlu0 0
        %758 = vperm.xlu0 %757, %v712
        %v759 = vpop.permute.xlu0 %758
        %762 = vset.pattern.permute.xlu0 0
        %763 = vperm.xlu0 %762, %v713
        %v764 = vpop.permute.xlu0 %763
        %767 = vset.pattern.permute.xlu0 0
        %768 = vperm.xlu0 %767, %v714
        %v769 = vpop.permute.xlu0 %768
        %772 = vset.pattern.permute.xlu0 0
        %773 = vperm.xlu0 %772, %v715
        %v774 = vpop.permute.xlu0 %773
        %777 = vset.pattern.permute.xlu0 0
        %778 = vperm.xlu0 %777, %v716
        %v779 = vpop.permute.xlu0 %778
        %782 = vset.pattern.permute.xlu0 0
        %783 = vperm.xlu0 %782, %v717
        %v784 = vpop.permute.xlu0 %783
        %787 = vset.pattern.permute.xlu0 0
        %788 = vperm.xlu0 %787, %v718
        %v789 = vpop.permute.xlu0 %788
        %792 = vset.pattern.permute.xlu0 0
        %793 = vperm.xlu0 %792, %v719
        %v794 = vpop.permute.xlu0 %793
        %797 = vset.pattern.permute.xlu0 0
        %798 = vperm.xlu0 %797, %v720
        %v799 = vpop.permute.xlu0 %798
        %vm801 = vcmask 523264
        %v803 = vsel %vm801, %v674, 0
        %v806 = vsel %vm801, %v676, 0
        %v809 = vsel %vm801, %v678, 0
        %v812 = vsel %vm801, %v680, 0
        %v815 = vsel %vm801, %v682, 0
        %v818 = vsel %vm801, %v684, 0
        %v821 = vsel %vm801, %v686, 0
        %v824 = vsel %vm801, %v688, 0
        %v827 = vsel %vm801, %v690, 0
        %v830 = vsel %vm801, %v692, 0
        %v833 = vsel %vm801, %v694, 0
        %v836 = vsel %vm801, %v696, 0
        %v839 = vsel %vm801, %v698, 0
        %v842 = vsel %vm801, %v700, 0
        %v845 = vsel %vm801, %v702, 0
        %v848 = vsel %vm801, %v704, 0
        %850 = vmatpush.msra.mxu0 %v624
        %851 = vmatpush.msra.mxu0 %v623
        %852 = vmatpush.msra.mxu0 %v622
        %853 = vmatpush.msra.mxu0 %v621
        %854 = vmatpush.msra.mxu0 %v620
        %855 = vmatpush.msra.mxu0 %v619
        %856 = vmatpush.msra.mxu0 %v618
        %857 = vmatpush.msra.mxu0 %v617
        %858 = vmatpush.msra.mxu0 %v648
        %859 = vmatpush.msra.mxu0 %v647
        %860 = vmatpush.msra.mxu0 %v646
        %861 = vmatpush.msra.mxu0 %v645
        %862 = vmatpush.msra.mxu0 %v644
        %863 = vmatpush.msra.mxu0 %v643
        %864 = vmatpush.msra.mxu0 %v642
        %865 = vmatpush.msra.mxu0 %v641
        %866 = vmatmul.f32.gmra.mxu0 %v673
        %v867 = vpop.f32.mrf.mxu0
        %v868 = vadd.f32 %v724, %v867
        %869 = vmatmul.f32.gmra.mxu0 %v675
        %v870 = vpop.f32.mrf.mxu0
        %v871 = vadd.f32 %v729, %v870
        %872 = vmatmul.f32.gmra.mxu0 %v677
        %v873 = vpop.f32.mrf.mxu0
        %v874 = vadd.f32 %v734, %v873
        %875 = vmatmul.f32.gmra.mxu0 %v679
        %v876 = vpop.f32.mrf.mxu0
        %v877 = vadd.f32 %v739, %v876
        %878 = vmatmul.f32.gmra.mxu0 %v681
        %v879 = vpop.f32.mrf.mxu0
        %v880 = vadd.f32 %v744, %v879
        %881 = vmatmul.f32.gmra.mxu0 %v683
        %v882 = vpop.f32.mrf.mxu0
        %v883 = vadd.f32 %v749, %v882
        %884 = vmatmul.f32.gmra.mxu0 %v685
        %v885 = vpop.f32.mrf.mxu0
        %v886 = vadd.f32 %v754, %v885
        %887 = vmatmul.f32.gmra.mxu0 %v687
        %v888 = vpop.f32.mrf.mxu0
        %v889 = vadd.f32 %v759, %v888
        %890 = vmatmul.f32.gmra.mxu0 %v689
        %v891 = vpop.f32.mrf.mxu0
        %v892 = vadd.f32 %v764, %v891
        %893 = vmatmul.f32.gmra.mxu0 %v691
        %v894 = vpop.f32.mrf.mxu0
        %v895 = vadd.f32 %v769, %v894
        %896 = vmatmul.f32.gmra.mxu0 %v693
        %v897 = vpop.f32.mrf.mxu0
        %v898 = vadd.f32 %v774, %v897
        %899 = vmatmul.f32.gmra.mxu0 %v695
        %v900 = vpop.f32.mrf.mxu0
        %v901 = vadd.f32 %v779, %v900
        %902 = vmatmul.f32.gmra.mxu0 %v697
        %v903 = vpop.f32.mrf.mxu0
        %v904 = vadd.f32 %v784, %v903
        %905 = vmatmul.f32.gmra.mxu0 %v699
        %v906 = vpop.f32.mrf.mxu0
        %v907 = vadd.f32 %v789, %v906
        %908 = vmatmul.f32.gmra.mxu0 %v701
        %v909 = vpop.f32.mrf.mxu0
        %v910 = vadd.f32 %v794, %v909
        %911 = vmatmul.f32.gmra.mxu0 %v703
        %v912 = vpop.f32.mrf.mxu0
        %v913 = vadd.f32 %v799, %v912
        %914 = vdwg.mxu0
        %915 = vmatpush.msra.mxu0 0.0
        %916 = vmatpush.msra.mxu0 0.0
        %917 = vmatpush.msra.mxu0 0.0
        %918 = vmatpush.msra.mxu0 0.0
        %919 = vmatpush.msra.mxu0 0.0
        %920 = vmatpush.msra.mxu0 0.0
        %921 = vmatpush.msra.mxu0 0.0
        %922 = vmatpush.msra.mxu0 0.0
        %923 = vmatpush.msra.mxu0 %v672
        %924 = vmatpush.msra.mxu0 %v671
        %925 = vmatpush.msra.mxu0 %v670
        %926 = vmatpush.msra.mxu0 %v669
        %927 = vmatpush.msra.mxu0 %v668
        %928 = vmatpush.msra.mxu0 %v667
        %929 = vmatpush.msra.mxu0 %v666
        %930 = vmatpush.msra.mxu0 %v665
        %931 = vmatmul.f32.gmra.mxu0 %v803
        %v932 = vpop.f32.mrf.mxu0
        %v933 = vadd.f32 %v868, %v932
        %934 = vmatmul.f32.gmra.mxu0 %v806
        %v935 = vpop.f32.mrf.mxu0
        %v936 = vadd.f32 %v871, %v935
        %937 = vmatmul.f32.gmra.mxu0 %v809
        %v938 = vpop.f32.mrf.mxu0
        %v939 = vadd.f32 %v874, %v938
        %940 = vmatmul.f32.gmra.mxu0 %v812
        %v941 = vpop.f32.mrf.mxu0
        %v942 = vadd.f32 %v877, %v941
        %943 = vmatmul.f32.gmra.mxu0 %v815
        %v944 = vpop.f32.mrf.mxu0
        %v945 = vadd.f32 %v880, %v944
        %946 = vmatmul.f32.gmra.mxu0 %v818
        %v947 = vpop.f32.mrf.mxu0
        %v948 = vadd.f32 %v883, %v947
        %949 = vmatmul.f32.gmra.mxu0 %v821
        %v950 = vpop.f32.mrf.mxu0
        %v951 = vadd.f32 %v886, %v950
        %952 = vmatmul.f32.gmra.mxu0 %v824
        %v953 = vpop.f32.mrf.mxu0
        %v954 = vadd.f32 %v889, %v953
        %955 = vmatmul.f32.gmra.mxu0 %v827
        %v956 = vpop.f32.mrf.mxu0
        %v957 = vadd.f32 %v892, %v956
        %958 = vmatmul.f32.gmra.mxu0 %v830
        %v959 = vpop.f32.mrf.mxu0
        %v960 = vadd.f32 %v895, %v959
        %961 = vmatmul.f32.gmra.mxu0 %v833
        %v962 = vpop.f32.mrf.mxu0
        %v963 = vadd.f32 %v898, %v962
        %964 = vmatmul.f32.gmra.mxu0 %v836
        %v965 = vpop.f32.mrf.mxu0
        %v966 = vadd.f32 %v901, %v965
        %967 = vmatmul.f32.gmra.mxu0 %v839
        %v968 = vpop.f32.mrf.mxu0
        %v969 = vadd.f32 %v904, %v968
        %970 = vmatmul.f32.gmra.mxu0 %v842
        %v971 = vpop.f32.mrf.mxu0
        %v972 = vadd.f32 %v907, %v971
        %973 = vmatmul.f32.gmra.mxu0 %v845
        %v974 = vpop.f32.mrf.mxu0
        %v975 = vadd.f32 %v910, %v974
        %976 = vmatmul.f32.gmra.mxu0 %v848
        %v977 = vpop.f32.mrf.mxu0
        %v978 = vadd.f32 %v913, %v977
        %979 = vdwg.mxu0
        %v980 = vld [vmem:[%s7] sm:$0xf]
        %v981 = vld [vmem:[%s8] sm:$0xf]
        %983 = vset.pattern.permute.xlu0 0
        %984 = vperm.xlu0 %983, %v981
        %v985 = vpop.permute.xlu0 %984
        %987 = vmatpush.msra.mxu0 %v978
        %988 = vmatpush.msra.mxu0 %v975
        %989 = vmatpush.msra.mxu0 %v972
        %990 = vmatpush.msra.mxu0 %v969
        %991 = vmatpush.msra.mxu0 %v966
        %992 = vmatpush.msra.mxu0 %v963
        %993 = vmatpush.msra.mxu0 %v960
        %994 = vmatpush.msra.mxu0 %v957
        %995 = vmatpush.msra.mxu0 %v954
        %996 = vmatpush.msra.mxu0 %v951
        %997 = vmatpush.msra.mxu0 %v948
        %998 = vmatpush.msra.mxu0 %v945
        %999 = vmatpush.msra.mxu0 %v942
        %1000 = vmatpush.msra.mxu0 %v939
        %1001 = vmatpush.msra.mxu0 %v936
        %1002 = vmatpush.msra.mxu0 %v933
        %1003 = vmatmul.f32.gmra.mxu0 %v980
        %v1004 = vpop.f32.mrf.mxu0
        %v1005 = vadd.f32 %v985, %v1004
        %1006 = vdwg.mxu0
        %1007 = vst [vmem:[%s321] sm:$0xf] %v1005
        %s1008 = sand.u32 %s225, 1
        %s1009 = scalar_lea.sflag [#allocation3], %s1008
        %s1010 = sand.u32 %s225, 1
        %s1011 = smul.addr %s1010, 4
        %s1012 = scalar_lea.vmem [#allocation2], %s1011
        // Predicated region
        $region57: #{tpu_custom_call.1} parent=55 // pred_check
          %p1013 = pneg %p235
        $region58: #{tpu_custom_call.1} parent=55 // pred_check_branch
          %1015 = sbr.rel (%p1013) target = $region60
        $region59: #{tpu_custom_call.1} parent=55 // pred_region
          %1017 = vsyncadd %s1009, 0
          %s1018 = smul.addr %s23, 4
          %s1019 = scalar_lea.hbm %s9, %s1018
          %s1021 = sshll.u32 %s1012, 4
          %s1022 = int_to_ptr.vmem [resolvable:$true] %s1021
          %s1023 = sshll.u32 %s1019, 4
          %s1024 = int_to_ptr.hbm [resolvable:$true] %s1023
          %1026 = dma.vmem_to_hbm [thread:$0]  %s1022, 64, %s1024, %s1009
        $region60: #{tpu_custom_call.1} parent=55 // pred_fallthru
          _
      $region56: #{tpu_custom_call.1} parent=5 // pred_fallthru
        _
      %p1027 = scmp.le.s32.totalorder 2, %s18
      // Predicated region
      $region61: #{tpu_custom_call.1} parent=5 // pred_check
        %p1028 = pneg %p1027
      $region62: #{tpu_custom_call.1} parent=5 // pred_check_branch
        %1030 = sbr.rel (%p1028) target = $region64
      $region63: #{tpu_custom_call.1} parent=5 // pred_region
        %s1031 = ssub.s32 %s18, 2
        // Predicated region
        $region65: #{tpu_custom_call.1} parent=63 // pred_check
          %p1032 = pneg %p241
        $region66: #{tpu_custom_call.1} parent=63 // pred_check_branch
          %1034 = sbr.rel (%p1032) target = $region68
        $region67: #{tpu_custom_call.1} parent=63 // pred_region
          %s1035 = sand.u32 %s226, 1
          %s1036 = scalar_lea.sflag [#allocation3], %s1035
          %s1037 = sand.u32 %s226, 1
          %s1038 = smul.addr %s1037, 4
          %s1039 = scalar_lea.vmem [#allocation2], %s1038
          %1041 = dma.done %s1036, 64
        $region68: #{tpu_custom_call.1} parent=63 // pred_fallthru
          _
      $region64: #{tpu_custom_call.1} parent=5 // pred_fallthru
        _
    $region6: #{tpu_custom_call.1} parent=1 // loop_footer
      %s22 = sadd.s32 1, %s18
    $region7: #{tpu_custom_call.1} parent=1 // loop_footer_branch
      %17 = sbr.rel target = $region3
    $region8: #{tpu_custom_call.1} parent=1 // loop_exit
      _
    %1042 = vsyncpa [#allocation3], 1
    %s1043 = scalar_lea.sflag [#allocation3], 1
    %1044 = vsyncpa %s1043, 1

</llo_original>
